<compile_context>
chip_gen: v6e
topology: v6e:2x2x1
jax: 0.10.0
libtpu: 0.0.40
codegen_flags: <defaults>
</compile_context>

<pallas_src>
import numpy as np
import jax
import jax.numpy as jnp
from jax.experimental import pallas as pl
from jax.experimental.pallas import tpu as pltpu


def _subsample_indices(stride, resolution_x, resolution_z, template_number):
    """Token indices selected by the strided 2D subsampling (matches torch slicing)."""
    parts = []
    g = np.arange(resolution_x * resolution_x, dtype=np.int32).reshape(
        resolution_x, resolution_x
    )
    parts.append(g[::stride, ::stride].reshape(-1))
    off = resolution_x * resolution_x
    for t in range(template_number):
        g = np.arange(resolution_z * resolution_z, dtype=np.int32).reshape(
            resolution_z, resolution_z
        )
        parts.append(
            off + t * resolution_z * resolution_z + g[::stride, ::stride].reshape(-1)
        )
    return np.concatenate(parts).astype(np.int32)


def _make_gather_kernel(idx):
    """Kernel factory: `idx` is a static tuple of source-token indices."""
    idx = tuple(int(i) for i in idx)

    def kernel(x_ref, o_ref):
        # x_ref: (N, C) VMEM tile (batch dim squeezed by the BlockSpec).
        # o_ref: (n_out, C) VMEM tile.
        # Static slices from VMEM (no scalar table, no per-row DMA), then ONE
        # lane/sublane-dense store of the whole output block.
        pieces = [x_ref[pl.ds(i, 1), :] for i in idx]
        o_ref[...] = jnp.concatenate(pieces, axis=0)

    return kernel


def subsample_pallas(xz, *, stride, resolution_x, resolution_z, template_number):
    B, N, C = xz.shape
    assert N == resolution_x ** 2 + template_number * resolution_z ** 2

    idx = _subsample_indices(stride, resolution_x, resolution_z, template_number)
    n_out = int(idx.shape[0])

    return pl.pallas_call(
        _make_gather_kernel(idx),
        out_shape=jax.ShapeDtypeStruct((B, n_out, C), xz.dtype),
        grid=(B,),
        in_specs=[
            # Full (N, C) token slab per batch element; last two block dims equal the
            # full array dims, so the (8, 128) divisibility rule is satisfied for any
            # N / C. Batch dim is squeezed (block size None -> 1, squeezed).
            pl.BlockSpec((None, N, C), lambda b: (b, 0, 0)),
        ],
        out_specs=pl.BlockSpec((None, n_out, C), lambda b: (b, 0, 0)),
        compiler_params=pltpu.CompilerParams(
            dimension_semantics=("parallel",),  # independent batch rows -> v7x 2 TCs
        ),
    )(xz)


def subsample_ref(xz, *, stride, resolution_x, resolution_z, template_number):
    """Pure-JAX reference reproducing the PyTorch Subsample.forward exactly."""
    B, N, C = xz.shape
    rx, rz = resolution_x, resolution_z
    x_ = (
        xz[:, : rx * rx, :]
        .reshape(B, rx, rx, C)[:, ::stride, ::stride]
        .reshape(B, -1, C)
    )
    outs = [x_]
    for i in range(1, template_number + 1):
        z = xz[:, rx * rx + (i - 1) * rz * rz : rx * rx + i * rz * rz, :]
        z = z.reshape(B, rz, rz, C)[:, ::stride, ::stride].reshape(B, -1, C)
        outs.append(z)
    return jnp.concatenate(outs, axis=1)


if __name__ == "__main__":
    # Small config consistent with the module:
    #   resolution_x=8 (search grid 8x8), resolution_z=4 (template grid 4x4),
    #   template_number=2, stride=2  =>  N = 64 + 2*16 = 96 tokens, n_out = 16+8 = 24.
    stride = 2
    resolution_x = 8
    resolution_z = 4
    template_number = 2
    B, C = 2, 128
    N = resolution_x ** 2 + template_number * resolution_z ** 2

    key = jax.random.PRNGKey(0)
    xz = jax.random.normal(key, (B, N, C), dtype=jnp.float32)

    out = subsample_pallas(
        xz,
        stride=stride,
        resolution_x=resolution_x,
        resolution_z=resolution_z,
        template_number=template_number,
    )
    out = jax.block_until_ready(out)

    expected = subsample_ref(
        xz,
        stride=stride,
        resolution_x=resolution_x,
        resolution_z=resolution_z,
        template_number=template_number,
    )
    assert out.shape == expected.shape, (out.shape, expected.shape)
    np.testing.assert_allclose(np.asarray(out), np.asarray(expected), rtol=0, atol=0)

    print("KERNEL_OK")
</pallas_src>

<mosaic_0001>
module attributes {stable_mosaic.version = 11 : i64} {
  func.func @kernel(%arg0: i32, %arg1: memref<1x96x128xf32, #tpu.memory_space<vmem>>, %arg2: memref<1x24x128xf32, #tpu.memory_space<vmem>>) attributes {dimension_semantics = [#tpu.dimension_semantics<parallel>], iteration_bounds = array<i64: 2>, scalar_prefetch = 0 : i64, scratch_operands = 0 : i64, tpu.core_type = #tpu.core_type<tc>, window_params = [{transform_indices = @transform_0, window_bounds = array<i64: 1, 96, 128>}, {transform_indices = @transform_1, window_bounds = array<i64: 1, 24, 128>}]} {
    %c0 = arith.constant 0 : index
    %c0_0 = arith.constant 0 : index
    %c0_1 = arith.constant 0 : index
    %0 = vector.load %arg1[%c0, %c0_0, %c0_1] : memref<1x96x128xf32, #tpu.memory_space<vmem>>, vector<1x1x128xf32>
    %1 = vector.shape_cast %0 : vector<1x1x128xf32> to vector<1x128xf32>
    %c0_2 = arith.constant 0 : index
    %c2 = arith.constant 2 : index
    %c0_3 = arith.constant 0 : index
    %2 = vector.load %arg1[%c0_2, %c2, %c0_3] : memref<1x96x128xf32, #tpu.memory_space<vmem>>, vector<1x1x128xf32>
    %3 = vector.shape_cast %2 : vector<1x1x128xf32> to vector<1x128xf32>
    %c0_4 = arith.constant 0 : index
    %c4 = arith.constant 4 : index
    %c0_5 = arith.constant 0 : index
    %4 = vector.load %arg1[%c0_4, %c4, %c0_5] : memref<1x96x128xf32, #tpu.memory_space<vmem>>, vector<1x1x128xf32>
    %5 = vector.shape_cast %4 : vector<1x1x128xf32> to vector<1x128xf32>
    %c0_6 = arith.constant 0 : index
    %c6 = arith.constant 6 : index
    %c0_7 = arith.constant 0 : index
    %6 = vector.load %arg1[%c0_6, %c6, %c0_7] : memref<1x96x128xf32, #tpu.memory_space<vmem>>, vector<1x1x128xf32>
    %7 = vector.shape_cast %6 : vector<1x1x128xf32> to vector<1x128xf32>
    %c0_8 = arith.constant 0 : index
    %c16 = arith.constant 16 : index
    %c0_9 = arith.constant 0 : index
    %8 = vector.load %arg1[%c0_8, %c16, %c0_9] : memref<1x96x128xf32, #tpu.memory_space<vmem>>, vector<1x1x128xf32>
    %9 = vector.shape_cast %8 : vector<1x1x128xf32> to vector<1x128xf32>
    %c0_10 = arith.constant 0 : index
    %c18 = arith.constant 18 : index
    %c0_11 = arith.constant 0 : index
    %10 = vector.load %arg1[%c0_10, %c18, %c0_11] : memref<1x96x128xf32, #tpu.memory_space<vmem>>, vector<1x1x128xf32>
    %11 = vector.shape_cast %10 : vector<1x1x128xf32> to vector<1x128xf32>
    %c0_12 = arith.constant 0 : index
    %c20 = arith.constant 20 : index
    %c0_13 = arith.constant 0 : index
    %12 = vector.load %arg1[%c0_12, %c20, %c0_13] : memref<1x96x128xf32, #tpu.memory_space<vmem>>, vector<1x1x128xf32>
    %13 = vector.shape_cast %12 : vector<1x1x128xf32> to vector<1x128xf32>
    %c0_14 = arith.constant 0 : index
    %c22 = arith.constant 22 : index
    %c0_15 = arith.constant 0 : index
    %14 = vector.load %arg1[%c0_14, %c22, %c0_15] : memref<1x96x128xf32, #tpu.memory_space<vmem>>, vector<1x1x128xf32>
    %15 = vector.shape_cast %14 : vector<1x1x128xf32> to vector<1x128xf32>
    %c0_16 = arith.constant 0 : index
    %c32 = arith.constant 32 : index
    %c0_17 = arith.constant 0 : index
    %16 = vector.load %arg1[%c0_16, %c32, %c0_17] : memref<1x96x128xf32, #tpu.memory_space<vmem>>, vector<1x1x128xf32>
    %17 = vector.shape_cast %16 : vector<1x1x128xf32> to vector<1x128xf32>
    %c0_18 = arith.constant 0 : index
    %c34 = arith.constant 34 : index
    %c0_19 = arith.constant 0 : index
    %18 = vector.load %arg1[%c0_18, %c34, %c0_19] : memref<1x96x128xf32, #tpu.memory_space<vmem>>, vector<1x1x128xf32>
    %19 = vector.shape_cast %18 : vector<1x1x128xf32> to vector<1x128xf32>
    %c0_20 = arith.constant 0 : index
    %c36 = arith.constant 36 : index
    %c0_21 = arith.constant 0 : index
    %20 = vector.load %arg1[%c0_20, %c36, %c0_21] : memref<1x96x128xf32, #tpu.memory_space<vmem>>, vector<1x1x128xf32>
    %21 = vector.shape_cast %20 : vector<1x1x128xf32> to vector<1x128xf32>
    %c0_22 = arith.constant 0 : index
    %c38 = arith.constant 38 : index
    %c0_23 = arith.constant 0 : index
    %22 = vector.load %arg1[%c0_22, %c38, %c0_23] : memref<1x96x128xf32, #tpu.memory_space<vmem>>, vector<1x1x128xf32>
    %23 = vector.shape_cast %22 : vector<1x1x128xf32> to vector<1x128xf32>
    %c0_24 = arith.constant 0 : index
    %c48 = arith.constant 48 : index
    %c0_25 = arith.constant 0 : index
    %24 = vector.load %arg1[%c0_24, %c48, %c0_25] : memref<1x96x128xf32, #tpu.memory_space<vmem>>, vector<1x1x128xf32>
    %25 = vector.shape_cast %24 : vector<1x1x128xf32> to vector<1x128xf32>
    %c0_26 = arith.constant 0 : index
    %c50 = arith.constant 50 : index
    %c0_27 = arith.constant 0 : index
    %26 = vector.load %arg1[%c0_26, %c50, %c0_27] : memref<1x96x128xf32, #tpu.memory_space<vmem>>, vector<1x1x128xf32>
    %27 = vector.shape_cast %26 : vector<1x1x128xf32> to vector<1x128xf32>
    %c0_28 = arith.constant 0 : index
    %c52 = arith.constant 52 : index
    %c0_29 = arith.constant 0 : index
    %28 = vector.load %arg1[%c0_28, %c52, %c0_29] : memref<1x96x128xf32, #tpu.memory_space<vmem>>, vector<1x1x128xf32>
    %29 = vector.shape_cast %28 : vector<1x1x128xf32> to vector<1x128xf32>
    %c0_30 = arith.constant 0 : index
    %c54 = arith.constant 54 : index
    %c0_31 = arith.constant 0 : index
    %30 = vector.load %arg1[%c0_30, %c54, %c0_31] : memref<1x96x128xf32, #tpu.memory_space<vmem>>, vector<1x1x128xf32>
    %31 = vector.shape_cast %30 : vector<1x1x128xf32> to vector<1x128xf32>
    %c0_32 = arith.constant 0 : index
    %c64 = arith.constant 64 : index
    %c0_33 = arith.constant 0 : index
    %32 = vector.load %arg1[%c0_32, %c64, %c0_33] : memref<1x96x128xf32, #tpu.memory_space<vmem>>, vector<1x1x128xf32>
    %33 = vector.shape_cast %32 : vector<1x1x128xf32> to vector<1x128xf32>
    %c0_34 = arith.constant 0 : index
    %c66 = arith.constant 66 : index
    %c0_35 = arith.constant 0 : index
    %34 = vector.load %arg1[%c0_34, %c66, %c0_35] : memref<1x96x128xf32, #tpu.memory_space<vmem>>, vector<1x1x128xf32>
    %35 = vector.shape_cast %34 : vector<1x1x128xf32> to vector<1x128xf32>
    %c0_36 = arith.constant 0 : index
    %c72 = arith.constant 72 : index
    %c0_37 = arith.constant 0 : index
    %36 = vector.load %arg1[%c0_36, %c72, %c0_37] : memref<1x96x128xf32, #tpu.memory_space<vmem>>, vector<1x1x128xf32>
    %37 = vector.shape_cast %36 : vector<1x1x128xf32> to vector<1x128xf32>
    %c0_38 = arith.constant 0 : index
    %c74 = arith.constant 74 : index
    %c0_39 = arith.constant 0 : index
    %38 = vector.load %arg1[%c0_38, %c74, %c0_39] : memref<1x96x128xf32, #tpu.memory_space<vmem>>, vector<1x1x128xf32>
    %39 = vector.shape_cast %38 : vector<1x1x128xf32> to vector<1x128xf32>
    %c0_40 = arith.constant 0 : index
    %c80 = arith.constant 80 : index
    %c0_41 = arith.constant 0 : index
    %40 = vector.load %arg1[%c0_40, %c80, %c0_41] : memref<1x96x128xf32, #tpu.memory_space<vmem>>, vector<1x1x128xf32>
    %41 = vector.shape_cast %40 : vector<1x1x128xf32> to vector<1x128xf32>
    %c0_42 = arith.constant 0 : index
    %c82 = arith.constant 82 : index
    %c0_43 = arith.constant 0 : index
    %42 = vector.load %arg1[%c0_42, %c82, %c0_43] : memref<1x96x128xf32, #tpu.memory_space<vmem>>, vector<1x1x128xf32>
    %43 = vector.shape_cast %42 : vector<1x1x128xf32> to vector<1x128xf32>
    %c0_44 = arith.constant 0 : index
    %c88 = arith.constant 88 : index
    %c0_45 = arith.constant 0 : index
    %44 = vector.load %arg1[%c0_44, %c88, %c0_45] : memref<1x96x128xf32, #tpu.memory_space<vmem>>, vector<1x1x128xf32>
    %45 = vector.shape_cast %44 : vector<1x1x128xf32> to vector<1x128xf32>
    %c0_46 = arith.constant 0 : index
    %c90 = arith.constant 90 : index
    %c0_47 = arith.constant 0 : index
    %46 = vector.load %arg1[%c0_46, %c90, %c0_47] : memref<1x96x128xf32, #tpu.memory_space<vmem>>, vector<1x1x128xf32>
    %47 = vector.shape_cast %46 : vector<1x1x128xf32> to vector<1x128xf32>
    %48 = tpu.concatenate %1, %3, %5, %7, %9, %11, %13, %15, %17, %19, %21, %23, %25, %27, %29, %31 in 0 : vector<1x128xf32>, vector<1x128xf32>, vector<1x128xf32>, vector<1x128xf32>, vector<1x128xf32>, vector<1x128xf32>, vector<1x128xf32>, vector<1x128xf32>, vector<1x128xf32>, vector<1x128xf32>, vector<1x128xf32>, vector<1x128xf32>, vector<1x128xf32>, vector<1x128xf32>, vector<1x128xf32>, vector<1x128xf32> -> vector<16x128xf32>
    %49 = tpu.concatenate %33, %35, %37, %39, %41, %43, %45, %47 in 0 : vector<1x128xf32>, vector<1x128xf32>, vector<1x128xf32>, vector<1x128xf32>, vector<1x128xf32>, vector<1x128xf32>, vector<1x128xf32>, vector<1x128xf32> -> vector<8x128xf32>
    %50 = tpu.concatenate %48, %49 in 0 : vector<16x128xf32>, vector<8x128xf32> -> vector<24x128xf32>
    %c0_48 = arith.constant 0 : index
    %c0_49 = arith.constant 0 : index
    %c0_50 = arith.constant 0 : index
    %51 = vector.load %arg2[%c0_48, %c0_49, %c0_50] : memref<1x24x128xf32, #tpu.memory_space<vmem>>, vector<1x24x128xf32>
    %52 = vector.shape_cast %51 : vector<1x24x128xf32> to vector<24x128xf32>
    %53 = vector.shape_cast %50 : vector<24x128xf32> to vector<1x24x128xf32>
    tpu.vector_store %arg2[%c0_48, %c0_49, %c0_50], %53 {strides = array<i32>} : memref<1x24x128xf32, #tpu.memory_space<vmem>>, vector<1x24x128xf32>,
    return
  }
  func.func @transform_0(%arg0: i32) -> (i32, i32, i32) {
    %c0_i32 = arith.constant 0 : i32
    %c0_i32_0 = arith.constant 0 : i32
    %c0_i32_1 = arith.constant 0 : i32
    return %arg0, %c0_i32, %c0_i32_0 : i32, i32, i32
  }
  func.func @transform_1(%arg0: i32) -> (i32, i32, i32) {
    %c0_i32 = arith.constant 0 : i32
    %c0_i32_0 = arith.constant 0 : i32
    %c0_i32_1 = arith.constant 0 : i32
    return %arg0, %c0_i32, %c0_i32_0 : i32, i32, i32
  }
}

</mosaic_0001>

<llo_original>
// kernel: tpu_custom_call.1
$region0: #{tpu_custom_call.1}
  #allocation0 [shape = 'u32[]', space=smem, size = 0x4, offset = 0x4, fixed_abs, tag = 'smem constant byte address 0x4 - core index']
  #allocation1 [shape = 'u32[144,128]{1,0:T(1,128)}', space=vmem, size = 0x12000, scoped, tag = 'internal scratch']
  %s0 = inlined_call_operand.hbm [shape: f32[2,96,128], index: 0, kind: input, shape index: {}]
  %s1 = inlined_call_operand.hbm [shape: f32[2,24,128], index: 1, kind: output, shape index: {}]
  %s2 = sld [smem:[#allocation0]]
  $region41: #{tpu_custom_call.1} parent=0
    _
  %s4 = ssub.s32 1, %s2
  %s5 = scalar_select 0, %s4, %s2
  $region1: #{tpu_custom_call.1} parent=0
    #allocation2 [shape = 'u8[98304]{0}', space=vmem, size = 0x18000, scoped, tag = 'input window, operand 0']
    #allocation3 [shape = 's32[2]{0}', space=sflag, size = 0x8, scoped, tag = 'scoped memory for tpu_custom_call.1']
    #allocation4 [shape = 's32[2]{0}', space=sflag, size = 0x8, scoped, tag = 'scoped memory for tpu_custom_call.1']
    #allocation5 [shape = 'u8[24576]{0}', space=vmem, size = 0x6000, scoped, tag = 'output window, operand 0']
    %6 = vsyncpa [#allocation3], 0
    %s7 = scalar_lea.sflag [#allocation3], 1
    %8 = vsyncpa %s7, 0
    %9 = vsyncpa [#allocation4], 0
    %s10 = scalar_lea.sflag [#allocation4], 1
    %11 = vsyncpa %s10, 0
    loop: start=0, step=1, limit=4
    $region2: #{tpu_custom_call.1} parent=1 // loop_pre_header
      _
    $region3: #{tpu_custom_call.1} parent=1 // loop_header
      %s13 = sphi 0, %s17
      %p14 = scmp.ge.s32.totalorder %s13, 4
      %s23 = sphi 0, %s25
      %s26 = sphi 0, %s23
      %s27 = sphi 0, %s26
      %s43 = sphi 0, %s27
      %s49 = sphi 0, %s51
      %s52 = sphi 0, %s49
      %s53 = sphi 0, %s52
      %s69 = sphi 0, %s53
    $region4: #{tpu_custom_call.1} parent=1 // loop_header_branch
      %16 = sbr.rel (%p14) target = $region8
    $region5: #{tpu_custom_call.1} parent=1 // loop_body
      %s18 = ssub.s32 %s13, 1
      %s19 = ssub.s32 %s13, 2
      %s20 = sadd.s32 %s13, 1
      %s21 = ssub.s32 %s13, %s20
      %p22 = scmp.eq.s32.totalorder %s21, 0
      %s24 = sadd.s32 %s23, 1
      %s25 = scalar_select %p22, %s23, %s24
      %p28 = pneg %p22
      %p29 = scmp.eq.s32.totalorder %s13, 1
      %p30 = por %p28, %p29
      %p31 = scmp.ne.s32.totalorder %s23, %s26
      %p32 = scmp.eq.s32.totalorder %s13, 0
      %p33 = por %p31, %p32
      %p34 = scmp.ne.s32.totalorder %s23, %s26
      %p35 = scmp.eq.s32.totalorder %s18, 1
      %p36 = por %p34, %p35
      %p37 = scmp.ne.s32.totalorder %s26, %s27
      %p38 = scmp.eq.s32.totalorder %s18, 0
      %p39 = por %p37, %p38
      %p40 = scmp.ne.s32.totalorder %s26, %s27
      %p41 = scmp.eq.s32.totalorder %s19, 1
      %p42 = por %p40, %p41
      %p44 = scmp.ne.s32.totalorder %s27, %s43
      %p45 = scmp.eq.s32.totalorder %s19, 0
      %p46 = por %p44, %p45
      %s47 = ssub.s32 %s13, %s20
      %p48 = scmp.eq.s32.totalorder %s47, 0
      %s50 = sadd.s32 %s49, 1
      %s51 = scalar_select %p48, %s49, %s50
      %p54 = pneg %p48
      %p55 = scmp.eq.s32.totalorder %s13, 1
      %p56 = por %p54, %p55
      %p57 = scmp.ne.s32.totalorder %s49, %s52
      %p58 = scmp.eq.s32.totalorder %s13, 0
      %p59 = por %p57, %p58
      %p60 = scmp.ne.s32.totalorder %s49, %s52
      %p61 = scmp.eq.s32.totalorder %s18, 1
      %p62 = por %p60, %p61
      %p63 = scmp.ne.s32.totalorder %s52, %s53
      %p64 = scmp.eq.s32.totalorder %s18, 0
      %p65 = por %p63, %p64
      %p66 = scmp.ne.s32.totalorder %s52, %s53
      %p67 = scmp.eq.s32.totalorder %s19, 1
      %p68 = por %p66, %p67
      %p70 = scmp.ne.s32.totalorder %s53, %s69
      %p71 = scmp.eq.s32.totalorder %s19, 0
      %p72 = por %p70, %p71
      %p73 = scmp.le.s32.totalorder 1, %s13
      %p74 = scmp.lt.s32.totalorder %s13, 3
      %p75 = pnand %p73, %p74
      %p76 = pneg %p75
      // Predicated region
      $region9: #{tpu_custom_call.1} parent=5 // pred_check
        _
      $region10: #{tpu_custom_call.1} parent=5 // pred_check_branch
        %78 = sbr.rel (%p75) target = $region12
      $region11: #{tpu_custom_call.1} parent=5 // pred_region
        %s79 = ssub.s32 %s13, 1
      $region12: #{tpu_custom_call.1} parent=5 // pred_fallthru
        _
      %p80 = scmp.lt.s32.totalorder %s13, 2
      // Predicated region
      $region13: #{tpu_custom_call.1} parent=5 // pred_check
        %p81 = pneg %p80
      $region14: #{tpu_custom_call.1} parent=5 // pred_check_branch
        %83 = sbr.rel (%p81) target = $region16
      $region15: #{tpu_custom_call.1} parent=5 // pred_region
        // Predicated region
        $region17: #{tpu_custom_call.1} parent=15 // pred_check
          %p84 = pneg %p33
        $region18: #{tpu_custom_call.1} parent=15 // pred_check_branch
          %86 = sbr.rel (%p84) target = $region20
        $region19: #{tpu_custom_call.1} parent=15 // pred_region
          %s87 = sand.u32 %s23, 1
          %s88 = scalar_lea.sflag [#allocation3], %s87
          %s89 = sand.u32 %s23, 1
          %s90 = smul.addr %s89, 96
          %s91 = scalar_lea.vmem [#allocation2], %s90
          %s93 = ssub.s32 1536, 1536
          %94 = vsyncadd %s88, %s93
          %s95 = smul.addr %s13, 12
          %s96 = smul.addr %s95, 128
          %s97 = scalar_lea.hbm %s0, %s96
          %s98 = sshll.u32 %s91, 4
          %s99 = int_to_ptr.vmem [resolvable:$true] %s98
          %104 = dma.hbm_to_vmem [thread:$0]  %s97, 1536, %s99, %s88, 128, 128, 8
        $region20: #{tpu_custom_call.1} parent=15 // pred_fallthru
          _
      $region16: #{tpu_custom_call.1} parent=5 // pred_fallthru
        _
      %p105 = scmp.le.s32.totalorder 1, %s13
      %p106 = scmp.lt.s32.totalorder %s13, 3
      %p107 = pnand %p105, %p106
      %p108 = pneg %p107
      // Predicated region
      $region21: #{tpu_custom_call.1} parent=5 // pred_check
        _
      $region22: #{tpu_custom_call.1} parent=5 // pred_check_branch
        %110 = sbr.rel (%p107) target = $region24
      $region23: #{tpu_custom_call.1} parent=5 // pred_region
        %s111 = ssub.s32 %s13, 1
        %s112 = sand.u32 %s26, 1
        %s113 = scalar_lea.sflag [#allocation3], %s112
        %s114 = sand.u32 %s26, 1
        %s115 = smul.addr %s114, 96
        %s116 = scalar_lea.vmem [#allocation2], %s115
        // Predicated region
        $region25: #{tpu_custom_call.1} parent=23 // pred_check
          %p117 = pneg %p39
        $region26: #{tpu_custom_call.1} parent=23 // pred_check_branch
          %119 = sbr.rel (%p117) target = $region28
        $region27: #{tpu_custom_call.1} parent=23 // pred_region
          %120 = dma.done %s113, 1536
        $region28: #{tpu_custom_call.1} parent=23 // pred_fallthru
          _
        %s121 = sand.u32 %s26, 1
        %s122 = scalar_lea.sflag [#allocation3], %s121
        %s123 = sand.u32 %s26, 1
        %s124 = smul.addr %s123, 96
        %s125 = scalar_lea.vmem [#allocation2], %s124
        %p126 = pneg %p39
        %p127 = pneg %p36
        %p128 = pneg %p65
        %p129 = pneg %p62
        %s130 = sand.u32 %s52, 1
        %s131 = scalar_lea.sflag [#allocation4], %s130
        %s132 = sand.u32 %s52, 1
        %s133 = smul.addr %s132, 24
        %s134 = scalar_lea.vmem [#allocation5], %s133
        %v135 = vld [vmem:[%s116] sm:$0x1]
        %v136 = vld [vmem:[%s116 + $0x2] sm:$0x1]
        %v137 = vld [vmem:[%s116 + $0x4] sm:$0x1]
        %v138 = vld [vmem:[%s116 + $0x6] sm:$0x1]
        %v139 = vld [vmem:[%s116 + $0x10] sm:$0x1]
        %v140 = vld [vmem:[%s116 + $0x12] sm:$0x1]
        %v141 = vld [vmem:[%s116 + $0x14] sm:$0x1]
        %v142 = vld [vmem:[%s116 + $0x16] sm:$0x1]
        %v143 = vld [vmem:[%s116 + $0x20] sm:$0x1]
        %v144 = vld [vmem:[%s116 + $0x22] sm:$0x1]
        %v145 = vld [vmem:[%s116 + $0x24] sm:$0x1]
        %v146 = vld [vmem:[%s116 + $0x26] sm:$0x1]
        %v147 = vld [vmem:[%s116 + $0x30] sm:$0x1]
        %v148 = vld [vmem:[%s116 + $0x32] sm:$0x1]
        %v149 = vld [vmem:[%s116 + $0x34] sm:$0x1]
        %v150 = vld [vmem:[%s116 + $0x36] sm:$0x1]
        %v151 = vld [vmem:[%s116 + $0x40] sm:$0x1]
        %v152 = vld [vmem:[%s116 + $0x42] sm:$0x1]
        %v153 = vld [vmem:[%s116 + $0x48] sm:$0x1]
        %v154 = vld [vmem:[%s116 + $0x4a] sm:$0x1]
        %v155 = vld [vmem:[%s116 + $0x50] sm:$0x1]
        %v156 = vld [vmem:[%s116 + $0x52] sm:$0x1]
        %v157 = vld [vmem:[%s116 + $0x58] sm:$0x1]
        %v158 = vld [vmem:[%s116 + $0x5a] sm:$0x1]
        %v160 = vrot.slane %v136, 7
        %v163 = vrot.slane %v137, 6
        %v166 = vrot.slane %v138, 5
        %v169 = vrot.slane %v139, 4
        %v172 = vrot.slane %v140, 3
        %v175 = vrot.slane %v141, 2
        %v178 = vrot.slane %v142, 1
        %v181 = vrot.slane %v144, 7
        %v184 = vrot.slane %v145, 6
        %v187 = vrot.slane %v146, 5
        %v190 = vrot.slane %v147, 4
        %v193 = vrot.slane %v148, 3
        %v196 = vrot.slane %v149, 2
        %v199 = vrot.slane %v150, 1
        %vm201 = vcmask 1040384
        %v202 = vsel %vm201, %v135, %v160
        %vm203 = vcmask 1041408
        %v204 = vsel %vm203, %v202, %v163
        %vm205 = vcmask 1042432
        %v206 = vsel %vm205, %v204, %v166
        %vm207 = vcmask 1043456
        %v208 = vsel %vm207, %v206, %v169
        %vm209 = vcmask 1044480
        %v210 = vsel %vm209, %v208, %v172
        %vm211 = vcmask 1045504
        %v212 = vsel %vm211, %v210, %v175
        %vm213 = vcmask 1046528
        %v214 = vsel %vm213, %v212, %v178
        %v215 = vsel %vm201, %v143, %v181
        %v216 = vsel %vm203, %v215, %v184
        %v217 = vsel %vm205, %v216, %v187
        %v218 = vsel %vm207, %v217, %v190
        %v219 = vsel %vm209, %v218, %v193
        %v220 = vsel %vm211, %v219, %v196
        %v221 = vsel %vm213, %v220, %v199
        %v223 = vrot.slane %v152, 7
        %v226 = vrot.slane %v153, 6
        %v229 = vrot.slane %v154, 5
        %v232 = vrot.slane %v155, 4
        %v235 = vrot.slane %v156, 3
        %v238 = vrot.slane %v157, 2
        %v241 = vrot.slane %v158, 1
        %v243 = vsel %vm201, %v151, %v223
        %v244 = vsel %vm203, %v243, %v226
        %v245 = vsel %vm205, %v244, %v229
        %v246 = vsel %vm207, %v245, %v232
        %v247 = vsel %vm209, %v246, %v235
        %v248 = vsel %vm211, %v247, %v238
        %v249 = vsel %vm213, %v248, %v241
        %250 = vst [vmem:[%s134] sm:$0xff] %v214
        %251 = vst [vmem:[%s134 + $0x8] sm:$0xff] %v221
        %252 = vst [vmem:[%s134 + $0x10] sm:$0xff] %v249
        %s253 = sand.u32 %s52, 1
        %s254 = scalar_lea.sflag [#allocation4], %s253
        %s255 = sand.u32 %s52, 1
        %s256 = smul.addr %s255, 24
        %s257 = scalar_lea.vmem [#allocation5], %s256
        // Predicated region
        $region29: #{tpu_custom_call.1} parent=23 // pred_check
          %p258 = pneg %p62
        $region30: #{tpu_custom_call.1} parent=23 // pred_check_branch
          %260 = sbr.rel (%p258) target = $region32
        $region31: #{tpu_custom_call.1} parent=23 // pred_region
          %s262 = ssub.s32 384, 384
          %263 = vsyncadd %s254, %s262
          %s264 = smul.addr %s18, 3
          %s265 = smul.addr %s264, 128
          %s266 = scalar_lea.hbm %s1, %s265
          %s267 = sshll.u32 %s257, 4
          %s268 = int_to_ptr.vmem [resolvable:$true] %s267
          %273 = dma.vmem_to_hbm [thread:$0]  %s268, 384, %s266, %s254, 128, 128, 8
        $region32: #{tpu_custom_call.1} parent=23 // pred_fallthru
          _
      $region24: #{tpu_custom_call.1} parent=5 // pred_fallthru
        _
      %p274 = scmp.le.s32.totalorder 2, %s13
      // Predicated region
      $region33: #{tpu_custom_call.1} parent=5 // pred_check
        %p275 = pneg %p274
      $region34: #{tpu_custom_call.1} parent=5 // pred_check_branch
        %277 = sbr.rel (%p275) target = $region36
      $region35: #{tpu_custom_call.1} parent=5 // pred_region
        %s278 = ssub.s32 %s13, 2
        // Predicated region
        $region37: #{tpu_custom_call.1} parent=35 // pred_check
          %p279 = pneg %p68
        $region38: #{tpu_custom_call.1} parent=35 // pred_check_branch
          %281 = sbr.rel (%p279) target = $region40
        $region39: #{tpu_custom_call.1} parent=35 // pred_region
          %s282 = sand.u32 %s53, 1
          %s283 = scalar_lea.sflag [#allocation4], %s282
          %s284 = sand.u32 %s53, 1
          %s285 = smul.addr %s284, 24
          %s286 = scalar_lea.vmem [#allocation5], %s285
          %287 = dma.done %s283, 384
        $region40: #{tpu_custom_call.1} parent=35 // pred_fallthru
          _
      $region36: #{tpu_custom_call.1} parent=5 // pred_fallthru
        _
    $region6: #{tpu_custom_call.1} parent=1 // loop_footer
      %s17 = sadd.s32 1, %s13
    $region7: #{tpu_custom_call.1} parent=1 // loop_footer_branch
      %12 = sbr.rel target = $region3
    $region8: #{tpu_custom_call.1} parent=1 // loop_exit
      _
    %288 = vsyncpa [#allocation3], 1
    %s289 = scalar_lea.sflag [#allocation3], 1
    %290 = vsyncpa %s289, 1
    %291 = vsyncpa [#allocation4], 1
    %s292 = scalar_lea.sflag [#allocation4], 1
    %293 = vsyncpa %s292, 1

</llo_original>
